<compile_context>
chip_gen: v7x
topology: tpu7x:2x2x1
jax: 0.10.0
libtpu: 0.0.40
codegen_flags: <defaults>
</compile_context>

<pallas_src>
import functools
import math

import numpy as np

import jax
import jax.numpy as jnp
from jax.experimental import pallas as pl
from jax.experimental.pallas import tpu as pltpu


# --------------------------------------------------------------------------
# Interpolation-matrix construction (PyTorch align_corners=False semantics).
# --------------------------------------------------------------------------
def _source_coords(out_size, in_size, scale):
    """PyTorch upsample (align_corners=False, scale_factor given) coords."""
    d = np.arange(out_size, dtype=np.float64)
    src = (d + 0.5) / scale - 0.5
    src = np.maximum(src, 0.0)
    i0 = np.floor(src).astype(np.int64)
    i1 = np.minimum(i0 + 1, in_size - 1)
    lam1 = (src - i0).astype(np.float32)
    lam0 = (1.0 - lam1).astype(np.float32)
    return i0, i1, lam0, lam1


@functools.lru_cache(maxsize=32)
def _interp_matrices(h_in, w_in, scale):
    """Returns (A_h: (H_out,H_in), A_wT: (W_in,W_out)) as float32 numpy."""
    h_out = int(math.floor(h_in * scale))
    w_out = int(math.floor(w_in * scale))

    def build(out_size, in_size):
        i0, i1, lam0, lam1 = _source_coords(out_size, in_size, scale)
        a = np.zeros((out_size, in_size), np.float32)
        rows = np.arange(out_size)
        a[rows, i0] += lam0
        a[rows, i1] += lam1
        return a

    a_h = build(h_out, h_in)                 # (H_out, H_in)
    a_w = build(w_out, w_in)                 # (W_out, W_in)
    return a_h, np.ascontiguousarray(a_w.T)  # A_w^T: (W_in, W_out)


# --------------------------------------------------------------------------
# Pallas kernel: one (H_in, W_in) slice -> (H_out, W_out) slice.
# --------------------------------------------------------------------------
def _bilinear_kernel(x_ref, ah_ref, awt_ref, o_ref):
    # x_ref: (1, H_in, W_in)   ah_ref: (H_out, H_in)   awt_ref: (W_in, W_out)
    # o_ref: (1, H_out, W_out)
    x = x_ref[0]
    t = jnp.dot(x, awt_ref[...], preferred_element_type=jnp.float32)   # (H_in, W_out)
    y = jnp.dot(ah_ref[...], t, preferred_element_type=jnp.float32)    # (H_out, W_out)
    o_ref[0] = y.astype(o_ref.dtype)


def upsample_bilinear_pallas(x_nchw, scale):
    """Bilinear upsample (align_corners=False) of an NCHW tensor."""
    n, c, h, w = x_nchw.shape
    h_out = int(math.floor(h * scale))
    w_out = int(math.floor(w * scale))
    a_h_np, a_wt_np = _interp_matrices(h, w, float(scale))
    a_h = jnp.asarray(a_h_np)
    a_wt = jnp.asarray(a_wt_np)

    b = n * c
    x2 = x_nchw.reshape(b, h, w)             # free leading-dim collapse

    itemsize = jnp.dtype(x_nchw.dtype).itemsize
    flops = 2 * b * (h * w * w_out + h_out * h * w_out)
    bytes_accessed = int(
        b * h * w * itemsize + b * h_out * w_out * itemsize
        + a_h.size * 4 + a_wt.size * 4
    )

    out = pl.pallas_call(
        _bilinear_kernel,
        out_shape=jax.ShapeDtypeStruct((b, h_out, w_out), x_nchw.dtype),
        grid_spec=pltpu.PrefetchScalarGridSpec(
            num_scalar_prefetch=0,
            grid=(b,),
            in_specs=[
                pl.BlockSpec((1, h, w), lambda i: (i, 0, 0)),
                pl.BlockSpec((h_out, h), lambda i: (0, 0)),
                pl.BlockSpec((w, w_out), lambda i: (0, 0)),
            ],
            out_specs=pl.BlockSpec((1, h_out, w_out), lambda i: (i, 0, 0)),
        ),
        compiler_params=pltpu.CompilerParams(
            dimension_semantics=("parallel",),
            vmem_limit_bytes=32 * 1024 * 1024,
        ),
        cost_estimate=pl.CostEstimate(
            flops=flops, transcendentals=0, bytes_accessed=bytes_accessed
        ),
    )(x2, a_h, a_wt)

    return out.reshape(n, c, h_out, w_out)


# --------------------------------------------------------------------------
# Module wrapper matching _UpsampleLinear.forward semantics.
# --------------------------------------------------------------------------
class UpsampleLinear:
    """JAX/Pallas counterpart of _UpsampleLinear(scale)."""

    def __init__(self, scale):
        self._mode = ('linear', 'bilinear', 'trilinear')
        self.scale = scale

    def __call__(self, x, scale=None):
        s = scale or self.scale
        if x.ndim == 4:                      # 'bilinear'
            return upsample_bilinear_pallas(x, float(s))
        # TODO(synk): 3-D 'linear' and 5-D 'trilinear' modes not implemented
        # as Pallas kernels (only the 4-D bilinear branch is exercised here).
        raise NotImplementedError("only 4-D (NCHW) bilinear is implemented")


# --------------------------------------------------------------------------
# Pure-JAX reference (gather formulation of the same PyTorch rule).
# --------------------------------------------------------------------------
def _reference_bilinear(x, scale):
    n, c, h, w = x.shape
    h_out = int(math.floor(h * scale))
    w_out = int(math.floor(w * scale))
    h0, h1, lh0, lh1 = _source_coords(h_out, h, scale)
    w0, w1, lw0, lw1 = _source_coords(w_out, w, scale)

    x00 = x[:, :, h0][:, :, :, w0]
    x01 = x[:, :, h0][:, :, :, w1]
    x10 = x[:, :, h1][:, :, :, w0]
    x11 = x[:, :, h1][:, :, :, w1]

    lh0 = jnp.asarray(lh0)[None, None, :, None]
    lh1 = jnp.asarray(lh1)[None, None, :, None]
    lw0 = jnp.asarray(lw0)[None, None, None, :]
    lw1 = jnp.asarray(lw1)[None, None, None, :]
    return lh0 * (lw0 * x00 + lw1 * x01) + lh1 * (lw0 * x10 + lw1 * x11)


if __name__ == "__main__":
    key = jax.random.PRNGKey(0)

    batch, channel, H, W = 2, 4, 16, 16
    scale = 2
    x = jax.random.normal(key, (batch, channel, H, W), jnp.float32)

    model = UpsampleLinear(scale)
    fwd = jax.jit(lambda a: model(a))

    out = jax.block_until_ready(fwd(x))
    assert out.shape == (batch, channel, H * scale, W * scale), out.shape

    ref = jax.block_until_ready(_reference_bilinear(x, float(scale)))
    err = float(jnp.max(jnp.abs(out - ref)))
    assert jnp.allclose(out, ref, atol=1e-4, rtol=1e-4), err

    print("KERNEL_OK")
</pallas_src>

<mosaic_0001>
module attributes {stable_mosaic.version = 11 : i64} {
  func.func @_bilinear_kernel(%arg0: i32, %arg1: memref<1x16x16xf32, #tpu.memory_space<vmem>>, %arg2: memref<32x16xf32, #tpu.memory_space<vmem>>, %arg3: memref<16x32xf32, #tpu.memory_space<vmem>>, %arg4: memref<1x32x32xf32, #tpu.memory_space<vmem>>) attributes {dimension_semantics = [#tpu.dimension_semantics<parallel>], iteration_bounds = array<i64: 8>, scalar_prefetch = 0 : i64, scratch_operands = 0 : i64, tpu.core_type = #tpu.core_type<tc>, window_params = [{transform_indices = @transform_0, window_bounds = array<i64: 1, 16, 16>}, {pipeline_mode = #tpu.pipeline_mode<synchronous>, transform_indices = @transform_1, window_bounds = array<i64: 32, 16>}, {pipeline_mode = #tpu.pipeline_mode<synchronous>, transform_indices = @transform_2, window_bounds = array<i64: 16, 32>}, {transform_indices = @transform_3, window_bounds = array<i64: 1, 32, 32>}]} {
    %c0 = arith.constant 0 : index
    %c0_0 = arith.constant 0 : index
    %c0_1 = arith.constant 0 : index
    %0 = vector.load %arg1[%c0, %c0_0, %c0_1] : memref<1x16x16xf32, #tpu.memory_space<vmem>>, vector<1x16x16xf32>
    %1 = vector.shape_cast %0 : vector<1x16x16xf32> to vector<16x16xf32>
    %c0_2 = arith.constant 0 : index
    %c0_3 = arith.constant 0 : index
    %2 = vector.load %arg3[%c0_2, %c0_3] : memref<16x32xf32, #tpu.memory_space<vmem>>, vector<16x32xf32>
    %cst = arith.constant dense<0.000000e+00> : vector<16x32xf32>
    %3 = tpu.matmul %1, %2, %cst {dimension_numbers = #tpu.dot_dimension_numbers<[1], [0], [0], [1], [0, 0, 1, 1], [], []>} : vector<16x16xf32>, vector<16x32xf32>, vector<16x32xf32> -> vector<16x32xf32>
    %c0_4 = arith.constant 0 : index
    %c0_5 = arith.constant 0 : index
    %4 = vector.load %arg2[%c0_4, %c0_5] : memref<32x16xf32, #tpu.memory_space<vmem>>, vector<32x16xf32>
    %cst_6 = arith.constant dense<0.000000e+00> : vector<32x32xf32>
    %5 = tpu.matmul %4, %3, %cst_6 {dimension_numbers = #tpu.dot_dimension_numbers<[1], [0], [0], [1], [0, 0, 1, 1], [], []>} : vector<32x16xf32>, vector<16x32xf32>, vector<32x32xf32> -> vector<32x32xf32>
    %c0_7 = arith.constant 0 : index
    %c0_8 = arith.constant 0 : index
    %c0_9 = arith.constant 0 : index
    %6 = vector.load %arg4[%c0_7, %c0_8, %c0_9] : memref<1x32x32xf32, #tpu.memory_space<vmem>>, vector<1x32x32xf32>
    %7 = vector.shape_cast %6 : vector<1x32x32xf32> to vector<32x32xf32>
    %8 = vector.shape_cast %5 : vector<32x32xf32> to vector<1x32x32xf32>
    tpu.vector_store %arg4[%c0_7, %c0_8, %c0_9], %8 {strides = array<i32>} : memref<1x32x32xf32, #tpu.memory_space<vmem>>, vector<1x32x32xf32>,
    return
  }
  func.func @transform_0(%arg0: i32) -> (i32, i32, i32) {
    %c0_i32 = arith.constant 0 : i32
    %c0_i32_0 = arith.constant 0 : i32
    %c0_i32_1 = arith.constant 0 : i32
    return %arg0, %c0_i32, %c0_i32_0 : i32, i32, i32
  }
  func.func @transform_1(%arg0: i32) -> (i32, i32) {
    %c0_i32 = arith.constant 0 : i32
    %c0_i32_0 = arith.constant 0 : i32
    %c0_i32_1 = arith.constant 0 : i32
    return %c0_i32, %c0_i32_0 : i32, i32
  }
  func.func @transform_2(%arg0: i32) -> (i32, i32) {
    %c0_i32 = arith.constant 0 : i32
    %c0_i32_0 = arith.constant 0 : i32
    %c0_i32_1 = arith.constant 0 : i32
    return %c0_i32, %c0_i32_0 : i32, i32
  }
  func.func @transform_3(%arg0: i32) -> (i32, i32, i32) {
    %c0_i32 = arith.constant 0 : i32
    %c0_i32_0 = arith.constant 0 : i32
    %c0_i32_1 = arith.constant 0 : i32
    return %arg0, %c0_i32, %c0_i32_0 : i32, i32, i32
  }
}

</mosaic_0001>

<llo_original>
// kernel: _lambda_.1
$region0: #{_lambda_.1}
  #allocation0 [shape = 'u32[]', space=smem, size = 0x4, offset = 0x4, fixed_abs, tag = 'smem constant byte address 0x4 - core index']
  #allocation1 [shape = 'u32[144,128]{1,0:T(1,128)}', space=vmem, size = 0x12000, scoped, tag = 'internal scratch']
  %s0 = inlined_call_operand.hbm [shape: f32[8,16,16], index: 0, kind: input, shape index: {}]
  %s1 = inlined_call_operand.hbm [shape: f32[32,16], index: 1, kind: input, shape index: {}]
  %s2 = inlined_call_operand.hbm [shape: f32[16,32], index: 2, kind: input, shape index: {}]
  %s3 = inlined_call_operand.hbm [shape: f32[8,32,32], index: 3, kind: output, shape index: {}]
  %s4 = sld [smem:[#allocation0]]
  $region57: #{_lambda_.1} parent=0
    _
  %s6 = ssub.s32 1, %s4
  %s7 = scalar_select 0, %s6, %s4
  $region1: #{_lambda_.1} parent=0
    #allocation2 [shape = 'u8[16384]{0}', space=vmem, size = 0x4000, scoped, tag = 'input window, operand 0']
    #allocation3 [shape = 's32[2]{0}', space=sflag, size = 0x8, scoped, tag = 'scoped memory for _lambda_.1']
    #allocation4 [shape = 's32[2]{0}', space=sflag, size = 0x8, scoped, tag = 'scoped memory for _lambda_.1']
    #allocation5 [shape = 'u8[16384]{0}', space=vmem, size = 0x4000, scoped, tag = 'input window, operand 1, single buffered']
    #allocation6 [shape = 's32[1]{0}', space=sflag, size = 0x4, scoped, tag = 'scoped memory for _lambda_.1']
    #allocation7 [shape = 'u8[8192]{0}', space=vmem, size = 0x2000, scoped, tag = 'input window, operand 2, single buffered']
    #allocation8 [shape = 'u8[32768]{0}', space=vmem, size = 0x8000, scoped, tag = 'output window, operand 0']
    %8 = vsyncpa [#allocation3], 0
    %s9 = scalar_lea.sflag [#allocation3], 1
    %10 = vsyncpa %s9, 0
    %11 = vsyncpa [#allocation6], 0
    %12 = vsyncpa [#allocation4], 0
    %s13 = scalar_lea.sflag [#allocation4], 1
    %14 = vsyncpa %s13, 0
    loop: start=0, step=1, limit=10
    $region2: #{_lambda_.1} parent=1 // loop_pre_header
      _
    $region3: #{_lambda_.1} parent=1 // loop_header
      %s16 = sphi 0, %s20
      %p17 = scmp.ge.s32.totalorder %s16, 10
      %s26 = sphi 0, %s28
      %s29 = sphi 0, %s26
      %s30 = sphi 0, %s29
      %s46 = sphi 0, %s30
      %s50 = sphi 0, %s50
      %s52 = sphi 0, %s50
      %s53 = sphi 0, %s52
      %s67 = sphi 0, %s53
      %s71 = sphi 0, %s71
      %s73 = sphi 0, %s71
      %s74 = sphi 0, %s73
      %s88 = sphi 0, %s74
      %s94 = sphi 0, %s96
      %s97 = sphi 0, %s94
      %s98 = sphi 0, %s97
      %s114 = sphi 0, %s98
    $region4: #{_lambda_.1} parent=1 // loop_header_branch
      %19 = sbr.rel (%p17) target = $region8
    $region5: #{_lambda_.1} parent=1 // loop_body
      %s21 = ssub.s32 %s16, 1
      %s22 = ssub.s32 %s16, 2
      %s23 = sadd.s32 %s16, 1
      %s24 = ssub.s32 %s16, %s23
      %p25 = scmp.eq.s32.totalorder %s24, 0
      %s27 = sadd.s32 %s26, 1
      %s28 = scalar_select %p25, %s26, %s27
      %p31 = pneg %p25
      %p32 = scmp.eq.s32.totalorder %s16, 7
      %p33 = por %p31, %p32
      %p34 = scmp.ne.s32.totalorder %s26, %s29
      %p35 = scmp.eq.s32.totalorder %s16, 0
      %p36 = por %p34, %p35
      %p37 = scmp.ne.s32.totalorder %s26, %s29
      %p38 = scmp.eq.s32.totalorder %s21, 7
      %p39 = por %p37, %p38
      %p40 = scmp.ne.s32.totalorder %s29, %s30
      %p41 = scmp.eq.s32.totalorder %s21, 0
      %p42 = por %p40, %p41
      %p43 = scmp.ne.s32.totalorder %s29, %s30
      %p44 = scmp.eq.s32.totalorder %s22, 7
      %p45 = por %p43, %p44
      %p47 = scmp.ne.s32.totalorder %s30, %s46
      %p48 = scmp.eq.s32.totalorder %s22, 0
      %p49 = por %p47, %p48
      %s51 = sadd.s32 %s50, 1
      %p54 = scmp.eq.s32.totalorder %s16, 7
      %p55 = scmp.ne.s32.totalorder %s50, %s52
      %p56 = scmp.eq.s32.totalorder %s16, 0
      %p57 = por %p55, %p56
      %p58 = scmp.ne.s32.totalorder %s50, %s52
      %p59 = scmp.eq.s32.totalorder %s21, 7
      %p60 = por %p58, %p59
      %p61 = scmp.ne.s32.totalorder %s52, %s53
      %p62 = scmp.eq.s32.totalorder %s21, 0
      %p63 = por %p61, %p62
      %p64 = scmp.ne.s32.totalorder %s52, %s53
      %p65 = scmp.eq.s32.totalorder %s22, 7
      %p66 = por %p64, %p65
      %p68 = scmp.ne.s32.totalorder %s53, %s67
      %p69 = scmp.eq.s32.totalorder %s22, 0
      %p70 = por %p68, %p69
      %s72 = sadd.s32 %s71, 1
      %p75 = scmp.eq.s32.totalorder %s16, 7
      %p76 = scmp.ne.s32.totalorder %s71, %s73
      %p77 = scmp.eq.s32.totalorder %s16, 0
      %p78 = por %p76, %p77
      %p79 = scmp.ne.s32.totalorder %s71, %s73
      %p80 = scmp.eq.s32.totalorder %s21, 7
      %p81 = por %p79, %p80
      %p82 = scmp.ne.s32.totalorder %s73, %s74
      %p83 = scmp.eq.s32.totalorder %s21, 0
      %p84 = por %p82, %p83
      %p85 = scmp.ne.s32.totalorder %s73, %s74
      %p86 = scmp.eq.s32.totalorder %s22, 7
      %p87 = por %p85, %p86
      %p89 = scmp.ne.s32.totalorder %s74, %s88
      %p90 = scmp.eq.s32.totalorder %s22, 0
      %p91 = por %p89, %p90
      %s92 = ssub.s32 %s16, %s23
      %p93 = scmp.eq.s32.totalorder %s92, 0
      %s95 = sadd.s32 %s94, 1
      %s96 = scalar_select %p93, %s94, %s95
      %p99 = pneg %p93
      %p100 = scmp.eq.s32.totalorder %s16, 7
      %p101 = por %p99, %p100
      %p102 = scmp.ne.s32.totalorder %s94, %s97
      %p103 = scmp.eq.s32.totalorder %s16, 0
      %p104 = por %p102, %p103
      %p105 = scmp.ne.s32.totalorder %s94, %s97
      %p106 = scmp.eq.s32.totalorder %s21, 7
      %p107 = por %p105, %p106
      %p108 = scmp.ne.s32.totalorder %s97, %s98
      %p109 = scmp.eq.s32.totalorder %s21, 0
      %p110 = por %p108, %p109
      %p111 = scmp.ne.s32.totalorder %s97, %s98
      %p112 = scmp.eq.s32.totalorder %s22, 7
      %p113 = por %p111, %p112
      %p115 = scmp.ne.s32.totalorder %s98, %s114
      %p116 = scmp.eq.s32.totalorder %s22, 0
      %p117 = por %p115, %p116
      %p118 = scmp.le.s32.totalorder 1, %s16
      %p119 = scmp.lt.s32.totalorder %s16, 9
      %p120 = pnand %p118, %p119
      %p121 = pneg %p120
      // Predicated region
      $region9: #{_lambda_.1} parent=5 // pred_check
        _
      $region10: #{_lambda_.1} parent=5 // pred_check_branch
        %123 = sbr.rel (%p120) target = $region12
      $region11: #{_lambda_.1} parent=5 // pred_region
        %s124 = ssub.s32 %s16, 1
        // Predicated region
        $region13: #{_lambda_.1} parent=11 // pred_check
          %p125 = pneg %p63
        $region14: #{_lambda_.1} parent=11 // pred_check_branch
          %127 = sbr.rel (%p125) target = $region16
        $region15: #{_lambda_.1} parent=11 // pred_region
          %s129 = ssub.s32 512, 512
          %130 = vsyncadd [#allocation6], %s129
          %s131 = sshll.u32 [#allocation5], 4
          %s132 = int_to_ptr.vmem [resolvable:$true] %s131
          %137 = dma.hbm_to_vmem [thread:$0]  %s1, 512, %s132, [#allocation6], 128, 128, 8
        $region16: #{_lambda_.1} parent=11 // pred_fallthru
          _
        // Predicated region
        $region17: #{_lambda_.1} parent=11 // pred_check
          %p138 = pneg %p84
        $region18: #{_lambda_.1} parent=11 // pred_check_branch
          %140 = sbr.rel (%p138) target = $region20
        $region19: #{_lambda_.1} parent=11 // pred_region
          %s142 = ssub.s32 256, 256
          %143 = vsyncadd [#allocation6], %s142
          %s144 = sshll.u32 [#allocation7], 4
          %s145 = int_to_ptr.vmem [resolvable:$true] %s144
          %150 = dma.hbm_to_vmem [thread:$0]  %s2, 256, %s145, [#allocation6], 128, 128, 8
        $region20: #{_lambda_.1} parent=11 // pred_fallthru
          _
      $region12: #{_lambda_.1} parent=5 // pred_fallthru
        _
      %p151 = scmp.lt.s32.totalorder %s16, 8
      // Predicated region
      $region21: #{_lambda_.1} parent=5 // pred_check
        %p152 = pneg %p151
      $region22: #{_lambda_.1} parent=5 // pred_check_branch
        %154 = sbr.rel (%p152) target = $region24
      $region23: #{_lambda_.1} parent=5 // pred_region
        // Predicated region
        $region25: #{_lambda_.1} parent=23 // pred_check
          %p155 = pneg %p36
        $region26: #{_lambda_.1} parent=23 // pred_check_branch
          %157 = sbr.rel (%p155) target = $region28
        $region27: #{_lambda_.1} parent=23 // pred_region
          %s158 = sand.u32 %s26, 1
          %s159 = scalar_lea.sflag [#allocation3], %s158
          %s160 = sand.u32 %s26, 1
          %s161 = smul.addr %s160, 16
          %s162 = scalar_lea.vmem [#allocation2], %s161
          %s164 = ssub.s32 256, 256
          %165 = vsyncadd %s159, %s164
          %s166 = smul.addr %s16, 2
          %s167 = smul.addr %s166, 128
          %s168 = scalar_lea.hbm %s0, %s167
          %s169 = sshll.u32 %s162, 4
          %s170 = int_to_ptr.vmem [resolvable:$true] %s169
          %175 = dma.hbm_to_vmem [thread:$0]  %s168, 256, %s170, %s159, 128, 128, 8
        $region28: #{_lambda_.1} parent=23 // pred_fallthru
          _
      $region24: #{_lambda_.1} parent=5 // pred_fallthru
        _
      %p176 = scmp.le.s32.totalorder 1, %s16
      %p177 = scmp.lt.s32.totalorder %s16, 9
      %p178 = pnand %p176, %p177
      %p179 = pneg %p178
      // Predicated region
      $region29: #{_lambda_.1} parent=5 // pred_check
        _
      $region30: #{_lambda_.1} parent=5 // pred_check_branch
        %181 = sbr.rel (%p178) target = $region32
      $region31: #{_lambda_.1} parent=5 // pred_region
        %s182 = ssub.s32 %s16, 1
        %s183 = sand.u32 %s29, 1
        %s184 = scalar_lea.sflag [#allocation3], %s183
        %s185 = sand.u32 %s29, 1
        %s186 = smul.addr %s185, 16
        %s187 = scalar_lea.vmem [#allocation2], %s186
        // Predicated region
        $region33: #{_lambda_.1} parent=31 // pred_check
          %p188 = pneg %p42
        $region34: #{_lambda_.1} parent=31 // pred_check_branch
          %190 = sbr.rel (%p188) target = $region36
        $region35: #{_lambda_.1} parent=31 // pred_region
          %191 = dma.done %s184, 256
        $region36: #{_lambda_.1} parent=31 // pred_fallthru
          _
        // Predicated region
        $region37: #{_lambda_.1} parent=31 // pred_check
          %p192 = pneg %p63
        $region38: #{_lambda_.1} parent=31 // pred_check_branch
          %194 = sbr.rel (%p192) target = $region40
        $region39: #{_lambda_.1} parent=31 // pred_region
          %195 = dma.done [#allocation6], 512
        $region40: #{_lambda_.1} parent=31 // pred_fallthru
          _
        // Predicated region
        $region41: #{_lambda_.1} parent=31 // pred_check
          %p196 = pneg %p84
        $region42: #{_lambda_.1} parent=31 // pred_check_branch
          %198 = sbr.rel (%p196) target = $region44
        $region43: #{_lambda_.1} parent=31 // pred_region
          %199 = dma.done [#allocation6], 256
        $region44: #{_lambda_.1} parent=31 // pred_fallthru
          _
        %s200 = sand.u32 %s29, 1
        %s201 = scalar_lea.sflag [#allocation3], %s200
        %s202 = sand.u32 %s29, 1
        %s203 = smul.addr %s202, 16
        %s204 = scalar_lea.vmem [#allocation2], %s203
        %p205 = pneg %p42
        %p206 = pneg %p39
        %p207 = pneg %p63
        %p208 = pneg %p60
        %p209 = pneg %p84
        %p210 = pneg %p81
        %p211 = pneg %p110
        %p212 = pneg %p107
        %s213 = sand.u32 %s97, 1
        %s214 = scalar_lea.sflag [#allocation4], %s213
        %s215 = sand.u32 %s97, 1
        %s216 = smul.addr %s215, 32
        %s217 = scalar_lea.vmem [#allocation8], %s216
        %v218 = vld [vmem:[%s187] sm:$0xff]
        %v219 = vld [vmem:[%s187 + $0x8] sm:$0xff]
        %v220 = vld [vmem:[#allocation7] sm:$0xff]
        %v221 = vld [vmem:[#allocation7 + $0x8] sm:$0xff]
        %vm222 = vcmask 130048
        %v224 = vsel %vm222, %v218, 0
        %v227 = vsel %vm222, %v219, 0
        %229 = vmatprep.subr.mxu0 0.0
        %230 = vmatpush1.msra.mxu0 %v220
        %231 = vmatprep.subr.mxu0 0.0
        %232 = vmatpush1.msra.mxu0 %v221
        %233 = vmatprep.subr.mxu0 0.0
        %234 = vmatpush1.msra.mxu0 0.0
        %235 = vmatprep.subr.mxu0 0.0
        %236 = vmatpush1.msra.mxu0 0.0
        %237 = vmatprep.subr.mxu0 0.0
        %238 = vmatpush1.msra.mxu0 0.0
        %239 = vmatprep.subr.mxu0 0.0
        %240 = vmatpush1.msra.mxu0 0.0
        %241 = vmatprep.subr.mxu0 0.0
        %242 = vmatpush1.msra.mxu0 0.0
        %243 = vmatprep.subr.mxu0 0.0
        %244 = vmatpush1.msra.mxu0 0.0
        %245 = vmatprep.subr.mxu0 0.0
        %246 = vmatpush1.msra.mxu0 0.0
        %247 = vmatprep.subr.mxu0 0.0
        %248 = vmatpush1.msra.mxu0 0.0
        %249 = vmatprep.subr.mxu0 0.0
        %250 = vmatpush1.msra.mxu0 0.0
        %251 = vmatprep.subr.mxu0 0.0
        %252 = vmatpush1.msra.mxu0 0.0
        %253 = vmatprep.subr.mxu0 0.0
        %254 = vmatpush1.msra.mxu0 0.0
        %255 = vmatprep.subr.mxu0 0.0
        %256 = vmatpush1.msra.mxu0 0.0
        %257 = vmatprep.subr.mxu0 0.0
        %258 = vmatpush1.msra.mxu0 0.0
        %259 = vmatprep.subr.mxu0 0.0
        %260 = vmatpush1.msra.mxu0 0.0
        %261 = vmatprep.subr.mxu0 0.0
        %262 = vmatpush1.msra.mxu0 0.0
        %263 = vmatprep.subr.mxu0 0.0
        %264 = vmatpush1.msra.mxu0 0.0
        %265 = vmatprep.subr.mxu0 0.0
        %266 = vmatpush1.msra.mxu0 0.0
        %267 = vmatprep.subr.mxu0 0.0
        %268 = vmatpush1.msra.mxu0 0.0
        %269 = vmatprep.subr.mxu0 0.0
        %270 = vmatpush1.msra.mxu0 0.0
        %271 = vmatprep.subr.mxu0 0.0
        %272 = vmatpush1.msra.mxu0 0.0
        %273 = vmatprep.subr.mxu0 0.0
        %274 = vmatpush1.msra.mxu0 0.0
        %275 = vmatprep.subr.mxu0 0.0
        %276 = vmatpush1.msra.mxu0 0.0
        %277 = vmatprep.subr.mxu0 0.0
        %278 = vmatpush1.msra.mxu0 0.0
        %279 = vmatprep.subr.mxu0 0.0
        %280 = vmatpush1.msra.mxu0 0.0
        %281 = vmatprep.subr.mxu0 0.0
        %282 = vmatpush1.msra.mxu0 0.0
        %283 = vmatprep.subr.mxu0 0.0
        %284 = vmatpush1.msra.mxu0 0.0
        %285 = vmatprep.subr.mxu0 0.0
        %286 = vmatpush1.msra.mxu0 0.0
        %287 = vmatprep.subr.mxu0 0.0
        %288 = vmatpush1.msra.mxu0 0.0
        %289 = vmatprep.subr.mxu0 0.0
        %290 = vmatpush1.msra.mxu0 0.0
        %291 = vmatprep.subr.mxu0 0.0
        %292 = vmatpush1.msra.mxu0 0.0
        %293 = vmatprep.mubr.f32.mxu0 0.0
        %294 = vmatmul.mubr.f32.gmra.mrb[0].mxu0 %v224
        %v295 = vpop.f32.mrb[0].mxu0
        %v296 = vadd.f32 0.0, %v295
        %v297 = vpop.f32.mrb[0].mxu0
        %298 = vmatprep.mubr.f32.mxu0 0.0
        %299 = vmatmul.mubr.f32.gmra.mrb[0].mxu0 %v227
        %v300 = vpop.f32.mrb[0].mxu0
        %v301 = vadd.f32 0.0, %v300
        %v302 = vpop.f32.mrb[0].mxu0
        %303 = vdwg.mxu0
        %v304 = vld [vmem:[#allocation5] sm:$0xff]
        %v305 = vld [vmem:[#allocation5 + $0x8] sm:$0xff]
        %v306 = vld [vmem:[#allocation5 + $0x10] sm:$0xff]
        %v307 = vld [vmem:[#allocation5 + $0x18] sm:$0xff]
        %v309 = vsel %vm222, %v304, 0
        %v312 = vsel %vm222, %v305, 0
        %v315 = vsel %vm222, %v306, 0
        %v318 = vsel %vm222, %v307, 0
        %320 = vmatprep.subr.mxu0 0.0
        %321 = vmatpush1.msra.mxu0 %v296
        %322 = vmatprep.subr.mxu0 0.0
        %323 = vmatpush1.msra.mxu0 %v301
        %324 = vmatprep.subr.mxu0 0.0
        %325 = vmatpush1.msra.mxu0 0.0
        %326 = vmatprep.subr.mxu0 0.0
        %327 = vmatpush1.msra.mxu0 0.0
        %328 = vmatprep.subr.mxu0 0.0
        %329 = vmatpush1.msra.mxu0 0.0
        %330 = vmatprep.subr.mxu0 0.0
        %331 = vmatpush1.msra.mxu0 0.0
        %332 = vmatprep.subr.mxu0 0.0
        %333 = vmatpush1.msra.mxu0 0.0
        %334 = vmatprep.subr.mxu0 0.0
        %335 = vmatpush1.msra.mxu0 0.0
        %336 = vmatprep.subr.mxu0 0.0
        %337 = vmatpush1.msra.mxu0 0.0
        %338 = vmatprep.subr.mxu0 0.0
        %339 = vmatpush1.msra.mxu0 0.0
        %340 = vmatprep.subr.mxu0 0.0
        %341 = vmatpush1.msra.mxu0 0.0
        %342 = vmatprep.subr.mxu0 0.0
        %343 = vmatpush1.msra.mxu0 0.0
        %344 = vmatprep.subr.mxu0 0.0
        %345 = vmatpush1.msra.mxu0 0.0
        %346 = vmatprep.subr.mxu0 0.0
        %347 = vmatpush1.msra.mxu0 0.0
        %348 = vmatprep.subr.mxu0 0.0
        %349 = vmatpush1.msra.mxu0 0.0
        %350 = vmatprep.subr.mxu0 0.0
        %351 = vmatpush1.msra.mxu0 0.0
        %352 = vmatprep.subr.mxu0 0.0
        %353 = vmatpush1.msra.mxu0 0.0
        %354 = vmatprep.subr.mxu0 0.0
        %355 = vmatpush1.msra.mxu0 0.0
        %356 = vmatprep.subr.mxu0 0.0
        %357 = vmatpush1.msra.mxu0 0.0
        %358 = vmatprep.subr.mxu0 0.0
        %359 = vmatpush1.msra.mxu0 0.0
        %360 = vmatprep.subr.mxu0 0.0
        %361 = vmatpush1.msra.mxu0 0.0
        %362 = vmatprep.subr.mxu0 0.0
        %363 = vmatpush1.msra.mxu0 0.0
        %364 = vmatprep.subr.mxu0 0.0
        %365 = vmatpush1.msra.mxu0 0.0
        %366 = vmatprep.subr.mxu0 0.0
        %367 = vmatpush1.msra.mxu0 0.0
        %368 = vmatprep.subr.mxu0 0.0
        %369 = vmatpush1.msra.mxu0 0.0
        %370 = vmatprep.subr.mxu0 0.0
        %371 = vmatpush1.msra.mxu0 0.0
        %372 = vmatprep.subr.mxu0 0.0
        %373 = vmatpush1.msra.mxu0 0.0
        %374 = vmatprep.subr.mxu0 0.0
        %375 = vmatpush1.msra.mxu0 0.0
        %376 = vmatprep.subr.mxu0 0.0
        %377 = vmatpush1.msra.mxu0 0.0
        %378 = vmatprep.subr.mxu0 0.0
        %379 = vmatpush1.msra.mxu0 0.0
        %380 = vmatprep.subr.mxu0 0.0
        %381 = vmatpush1.msra.mxu0 0.0
        %382 = vmatprep.subr.mxu0 0.0
        %383 = vmatpush1.msra.mxu0 0.0
        %384 = vmatprep.mubr.f32.mxu0 0.0
        %385 = vmatmul.mubr.f32.gmra.mrb[0].mxu0 %v309
        %v386 = vpop.f32.mrb[0].mxu0
        %v387 = vadd.f32 0.0, %v386
        %v388 = vpop.f32.mrb[0].mxu0
        %389 = vmatprep.mubr.f32.mxu0 0.0
        %390 = vmatmul.mubr.f32.gmra.mrb[0].mxu0 %v312
        %v391 = vpop.f32.mrb[0].mxu0
        %v392 = vadd.f32 0.0, %v391
        %v393 = vpop.f32.mrb[0].mxu0
        %394 = vmatprep.mubr.f32.mxu0 0.0
        %395 = vmatmul.mubr.f32.gmra.mrb[0].mxu0 %v315
        %v396 = vpop.f32.mrb[0].mxu0
        %v397 = vadd.f32 0.0, %v396
        %v398 = vpop.f32.mrb[0].mxu0
        %399 = vmatprep.mubr.f32.mxu0 0.0
        %400 = vmatmul.mubr.f32.gmra.mrb[0].mxu0 %v318
        %v401 = vpop.f32.mrb[0].mxu0
        %v402 = vadd.f32 0.0, %v401
        %v403 = vpop.f32.mrb[0].mxu0
        %404 = vdwg.mxu0
        %vm405 = vcmask 261120
        %406 = vst.msk [vmem:[%s217] sm:$0xff] %vm405, %v387
        %407 = vst.msk [vmem:[%s217 + $0x8] sm:$0xff] %vm405, %v392
        %408 = vst.msk [vmem:[%s217 + $0x10] sm:$0xff] %vm405, %v397
        %409 = vst.msk [vmem:[%s217 + $0x18] sm:$0xff] %vm405, %v402
        %s410 = sand.u32 %s97, 1
        %s411 = scalar_lea.sflag [#allocation4], %s410
        %s412 = sand.u32 %s97, 1
        %s413 = smul.addr %s412, 32
        %s414 = scalar_lea.vmem [#allocation8], %s413
        // Predicated region
        $region45: #{_lambda_.1} parent=31 // pred_check
          %p415 = pneg %p107
        $region46: #{_lambda_.1} parent=31 // pred_check_branch
          %417 = sbr.rel (%p415) target = $region48
        $region47: #{_lambda_.1} parent=31 // pred_region
          %s419 = ssub.s32 512, 512
          %420 = vsyncadd %s411, %s419
          %s421 = smul.addr %s21, 4
          %s422 = smul.addr %s421, 128
          %s423 = scalar_lea.hbm %s3, %s422
          %s424 = sshll.u32 %s414, 4
          %s425 = int_to_ptr.vmem [resolvable:$true] %s424
          %430 = dma.vmem_to_hbm [thread:$0]  %s425, 512, %s423, %s411, 128, 128, 8
        $region48: #{_lambda_.1} parent=31 // pred_fallthru
          _
      $region32: #{_lambda_.1} parent=5 // pred_fallthru
        _
      %p431 = scmp.le.s32.totalorder 2, %s16
      // Predicated region
      $region49: #{_lambda_.1} parent=5 // pred_check
        %p432 = pneg %p431
      $region50: #{_lambda_.1} parent=5 // pred_check_branch
        %434 = sbr.rel (%p432) target = $region52
      $region51: #{_lambda_.1} parent=5 // pred_region
        %s435 = ssub.s32 %s16, 2
        // Predicated region
        $region53: #{_lambda_.1} parent=51 // pred_check
          %p436 = pneg %p113
        $region54: #{_lambda_.1} parent=51 // pred_check_branch
          %438 = sbr.rel (%p436) target = $region56
        $region55: #{_lambda_.1} parent=51 // pred_region
          %s439 = sand.u32 %s98, 1
          %s440 = scalar_lea.sflag [#allocation4], %s439
          %s441 = sand.u32 %s98, 1
          %s442 = smul.addr %s441, 32
          %s443 = scalar_lea.vmem [#allocation8], %s442
          %444 = dma.done %s440, 512
        $region56: #{_lambda_.1} parent=51 // pred_fallthru
          _
      $region52: #{_lambda_.1} parent=5 // pred_fallthru
        _
    $region6: #{_lambda_.1} parent=1 // loop_footer
      %s20 = sadd.s32 1, %s16
    $region7: #{_lambda_.1} parent=1 // loop_footer_branch
      %15 = sbr.rel target = $region3
    $region8: #{_lambda_.1} parent=1 // loop_exit
      _
    %445 = vsyncpa [#allocation3], 1
    %s446 = scalar_lea.sflag [#allocation3], 1
    %447 = vsyncpa %s446, 1
    %448 = vsyncpa [#allocation6], 1
    %449 = vsyncpa [#allocation4], 1
    %s450 = scalar_lea.sflag [#allocation4], 1
    %451 = vsyncpa %s450, 1

</llo_original>
